<compile_context>
chip_gen: v7x
topology: tpu7x:2x2x1
jax: 0.10.0
libtpu: 0.0.40
codegen_flags: <defaults>
</compile_context>

<pallas_src>
import functools

import jax
import jax.numpy as jnp
from jax import lax
from jax.experimental import pallas as pl
from jax.experimental.pallas import tpu as pltpu

_SUB = 256  # rows per in-kernel sub-tile


def _round_up(x, m):
    return (x + m - 1) // m * m


def mlp_kernel(x_ref, w1_ref, b1_ref, w2_ref, b2_ref, w3_ref, b3_ref, o_ref,
               *, sub_rows, n_sub):
    # Hoist resident operands out of the sub-tile loop (JAX does not CSE
    # loads/broadcasts inside loop bodies).
    w1 = w1_ref[...]            # (12, 128)   matmul dtype (bf16 or f32)
    w2 = w2_ref[...]            # (128, 128)  matmul dtype
    w3 = w3_ref[...]            # (1, 128)    f32 (VPU path)
    b1 = b1_ref[...]            # (1, 128)    f32
    b2 = b2_ref[...]            # (1, 128)    f32
    b3 = b3_ref[...]            # (1, 1)      f32

    def body(s, carry):
        r = pl.multiple_of(s * sub_rows, sub_rows)
        # In-kernel cast of the f32, unpadded x chunk (hidden under the x DMA).
        xc = x_ref[pl.ds(r, sub_rows), :].astype(w1.dtype)
        # Layer 1 + ReLU (MXU, f32 accumulate; epilogue f32 on VPU).
        h1 = jnp.dot(xc, w1, preferred_element_type=jnp.float32)
        h1 = jnp.maximum(h1 + b1, 0.0)
        # Layer 2 + ReLU.
        h2 = jnp.dot(h1.astype(w2.dtype), w2, preferred_element_type=jnp.float32)
        h2 = jnp.maximum(h2 + b2, 0.0)
        # Layer 3: 1-wide output -> VPU multiply + XLU lane reduce (no MXU
        # matmul against a mostly-zero weight, no lane padding).
        o = jnp.sum(h2 * w3, axis=-1, keepdims=True) + b3          # (sub, 1)
        o_ref[pl.ds(r, sub_rows), :] = o.astype(o_ref.dtype)
        return carry

    # Short static trip count -> unroll so h1/h2 live in vregs per sub-tile.
    lax.fori_loop(0, n_sub, body, 0, unroll=True)


@functools.partial(jax.jit, static_argnames=("tb", "matmul_dtype"))
def mlp_forward(x, params, *, tb=2048, matmul_dtype=jnp.bfloat16):
    """x: (B, 12) float32. params: torch-shaped weights/biases (out, in)."""
    out_dtype = x.dtype
    B, D_in = x.shape
    H1 = params["w1"].shape[0]            # 128
    H2 = params["w2"].shape[0]            # 128
    D_out = params["w3"].shape[0]         # 1

    # ---- batch tiling ----
    if B <= 2 * _SUB:
        # Tiny batch: single grid step, single sub-tile.
        tb_eff = _round_up(max(B, 1), 8)
        sub = tb_eff
    else:
        # Large batch: tile of <= tb rows (multiple of _SUB), and cap at
        # ceil(B/2) so there are >= 2 grid steps (both v7x TensorCores used).
        sub = _SUB
        tb_eff = _round_up(min(tb, pl.cdiv(B, 2)), sub)
    n_sub = tb_eff // sub
    B_pad = _round_up(B, tb_eff)

    # ---- prep operands (torch Linear stores weight as (out, in)) ----
    # x stays f32 and 12-wide in HBM; only pad batch rows when needed.
    x_p = x if B_pad == B else jnp.zeros((B_pad, D_in), x.dtype).at[:B].set(x)
    w1 = params["w1"].T.astype(matmul_dtype)                  # (12, 128)
    w2 = params["w2"].T.astype(matmul_dtype)                  # (128, 128)
    w3 = params["w3"].astype(jnp.float32)                     # (1, 128) row
    b1 = params["b1"].reshape(1, H1).astype(jnp.float32)
    b2 = params["b2"].reshape(1, H2).astype(jnp.float32)
    b3 = params["b3"].reshape(1, D_out).astype(jnp.float32)   # (1, 1)

    kernel = functools.partial(mlp_kernel, sub_rows=sub, n_sub=n_sub)

    wbytes = ((D_in * H1 + H1 * H2) * jnp.dtype(matmul_dtype).itemsize
              + (H1 + H2 + H2 * D_out + D_out) * 4)
    cost = pl.CostEstimate(
        flops=2 * B_pad * (D_in * H1 + H1 * H2 + H2 * D_out),
        transcendentals=0,
        bytes_accessed=B_pad * (D_in + D_out) * 4 + wbytes,
    )

    out = pl.pallas_call(
        kernel,
        out_shape=jax.ShapeDtypeStruct((B_pad, D_out), out_dtype),
        grid_spec=pltpu.PrefetchScalarGridSpec(
            num_scalar_prefetch=0,
            grid=(B_pad // tb_eff,),
            in_specs=[
                pl.BlockSpec((tb_eff, D_in), lambda i: (i, 0)),   # x tile (12-wide)
                pl.BlockSpec((D_in, H1), lambda i: (0, 0)),       # w1 (resident)
                pl.BlockSpec((1, H1), lambda i: (0, 0)),          # b1
                pl.BlockSpec((H1, H2), lambda i: (0, 0)),         # w2
                pl.BlockSpec((1, H2), lambda i: (0, 0)),          # b2
                pl.BlockSpec((1, H2), lambda i: (0, 0)),          # w3 row
                pl.BlockSpec((1, D_out), lambda i: (0, 0)),       # b3
            ],
            out_specs=pl.BlockSpec((tb_eff, D_out), lambda i: (i, 0)),
        ),
        compiler_params=pltpu.CompilerParams(
            dimension_semantics=("parallel",)),
        cost_estimate=cost,
    )(x_p, w1, b1, w2, b2, w3, b3)

    # Only batch padding (if any) to slice away; output is already 1-wide.
    return out if B_pad == B else out[:B]


def init_params(key):
    """Deterministic init mimicking torch.nn.Linear default (U[-1/sqrt(fan_in), +])."""
    ks = jax.random.split(key, 6)

    def lin(kw, kb, fan_in, fan_out):
        bound = 1.0 / jnp.sqrt(fan_in)
        w = jax.random.uniform(kw, (fan_out, fan_in), jnp.float32, -bound, bound)
        b = jax.random.uniform(kb, (fan_out,), jnp.float32, -bound, bound)
        return w, b

    w1, b1 = lin(ks[0], ks[1], 12, 128)
    w2, b2 = lin(ks[2], ks[3], 128, 128)
    w3, b3 = lin(ks[4], ks[5], 128, 1)
    return {"w1": w1, "b1": b1, "w2": w2, "b2": b2, "w3": w3, "b3": b3}


if __name__ == "__main__":
    key = jax.random.PRNGKey(0)
    kx, kp = jax.random.split(key)
    B = 16
    x = jax.random.normal(kx, (B, 12), jnp.float32)
    params = init_params(kp)

    # Pure-JAX reference of the torch forward.
    def ref(x, p):
        h = jnp.maximum(x @ p["w1"].T + p["b1"], 0.0)
        h = jnp.maximum(h @ p["w2"].T + p["b2"], 0.0)
        return h @ p["w3"].T + p["b3"]

    r = ref(x, params)

    # f32 matmul path (exact): tiny batch collapses to a single grid step.
    out_f32 = jax.block_until_ready(
        mlp_forward(x, params, matmul_dtype=jnp.float32))
    assert out_f32.shape == (B, 1)
    assert jnp.allclose(out_f32, r, atol=1e-5, rtol=1e-5)

    # Default bf16 matmul path (fast on MXU). Note: layer-1 precision is gated
    # by the in-kernel bf16 cast of x, hence the looser tolerance.
    out_bf16 = jax.block_until_ready(mlp_forward(x, params))
    assert out_bf16.shape == (B, 1)
    assert jnp.allclose(out_bf16, r, atol=5e-2, rtol=5e-2)

    # Larger, non-tile-multiple batch exercises the multi-step grid and the
    # in-kernel sub-tile loop (exact f32 path for the check).
    x_big = jax.random.normal(kx, (1000, 12), jnp.float32)
    out_big = jax.block_until_ready(
        mlp_forward(x_big, params, matmul_dtype=jnp.float32))
    assert out_big.shape == (1000, 1)
    assert jnp.allclose(out_big, ref(x_big, params), atol=1e-5, rtol=1e-5)

    print("KERNEL_OK")
</pallas_src>

<mosaic_0001>
module attributes {stable_mosaic.version = 11 : i64} {
  func.func @mlp_kernel(%arg0: i32, %arg1: memref<16x12xf32, #tpu.memory_space<vmem>>, %arg2: memref<12x128xf32, #tpu.memory_space<vmem>>, %arg3: memref<1x128xf32, #tpu.memory_space<vmem>>, %arg4: memref<128x128xf32, #tpu.memory_space<vmem>>, %arg5: memref<1x128xf32, #tpu.memory_space<vmem>>, %arg6: memref<1x128xf32, #tpu.memory_space<vmem>>, %arg7: memref<1x1xf32, #tpu.memory_space<vmem>>, %arg8: memref<16x1xf32, #tpu.memory_space<vmem>>) attributes {dimension_semantics = [#tpu.dimension_semantics<parallel>], iteration_bounds = array<i64: 1>, scalar_prefetch = 0 : i64, scratch_operands = 0 : i64, tpu.core_type = #tpu.core_type<tc>, window_params = [{transform_indices = @transform_0, window_bounds = array<i64: 16, 12>}, {pipeline_mode = #tpu.pipeline_mode<synchronous>, transform_indices = @transform_1, window_bounds = array<i64: 12, 128>}, {pipeline_mode = #tpu.pipeline_mode<synchronous>, transform_indices = @transform_2, window_bounds = array<i64: 1, 128>}, {pipeline_mode = #tpu.pipeline_mode<synchronous>, transform_indices = @transform_3, window_bounds = array<i64: 128, 128>}, {pipeline_mode = #tpu.pipeline_mode<synchronous>, transform_indices = @transform_4, window_bounds = array<i64: 1, 128>}, {pipeline_mode = #tpu.pipeline_mode<synchronous>, transform_indices = @transform_5, window_bounds = array<i64: 1, 128>}, {pipeline_mode = #tpu.pipeline_mode<synchronous>, transform_indices = @transform_6, window_bounds = array<i64: 1, 1>}, {transform_indices = @transform_7, window_bounds = array<i64: 16, 1>}]} {
    %c0 = arith.constant 0 : index
    %c0_0 = arith.constant 0 : index
    %0 = vector.load %arg2[%c0, %c0_0] : memref<12x128xf32, #tpu.memory_space<vmem>>, vector<12x128xf32>
    %c0_1 = arith.constant 0 : index
    %c0_2 = arith.constant 0 : index
    %1 = vector.load %arg4[%c0_1, %c0_2] : memref<128x128xf32, #tpu.memory_space<vmem>>, vector<128x128xf32>
    %c0_3 = arith.constant 0 : index
    %c0_4 = arith.constant 0 : index
    %2 = vector.load %arg6[%c0_3, %c0_4] : memref<1x128xf32, #tpu.memory_space<vmem>>, vector<1x128xf32>
    %c0_5 = arith.constant 0 : index
    %c0_6 = arith.constant 0 : index
    %3 = vector.load %arg3[%c0_5, %c0_6] : memref<1x128xf32, #tpu.memory_space<vmem>>, vector<1x128xf32>
    %c0_7 = arith.constant 0 : index
    %c0_8 = arith.constant 0 : index
    %4 = vector.load %arg5[%c0_7, %c0_8] : memref<1x128xf32, #tpu.memory_space<vmem>>, vector<1x128xf32>
    %c0_9 = arith.constant 0 : index
    %c0_10 = arith.constant 0 : index
    %5 = vector.load %arg7[%c0_9, %c0_10] : memref<1x1xf32, #tpu.memory_space<vmem>>, vector<1x1xf32>
    %c0_i32 = arith.constant 0 : i32
    %c16_i32 = arith.constant 16 : i32
    %6 = arith.muli %c0_i32, %c16_i32 : i32
    %7 = tpu.assume_multiple %6, 16 : i32
    %8 = arith.index_cast %7 : i32 to index
    %c0_11 = arith.constant 0 : index
    %9 = vector.load %arg1[%8, %c0_11] : memref<16x12xf32, #tpu.memory_space<vmem>>, vector<16x12xf32>
    %cst = arith.constant dense<0.000000e+00> : vector<16x128xf32>
    %10 = tpu.matmul %9, %0, %cst {dimension_numbers = #tpu.dot_dimension_numbers<[1], [0], [0], [1], [0, 0, 1, 1], [], []>} : vector<16x12xf32>, vector<12x128xf32>, vector<16x128xf32> -> vector<16x128xf32>
    %11 = vector.broadcast %3 : vector<1x128xf32> to vector<16x128xf32>
    %12 = arith.addf %10, %11 : vector<16x128xf32>
    %cst_12 = arith.constant 0.000000e+00 : f32
    %13 = vector.broadcast %cst_12 : f32 to vector<16x128xf32>
    %14 = arith.maximumf %12, %13 : vector<16x128xf32>
    %cst_13 = arith.constant dense<0.000000e+00> : vector<16x128xf32>
    %15 = tpu.matmul %14, %1, %cst_13 {dimension_numbers = #tpu.dot_dimension_numbers<[1], [0], [0], [1], [0, 0, 1, 1], [], []>} : vector<16x128xf32>, vector<128x128xf32>, vector<16x128xf32> -> vector<16x128xf32>
    %16 = vector.broadcast %4 : vector<1x128xf32> to vector<16x128xf32>
    %17 = arith.addf %15, %16 : vector<16x128xf32>
    %cst_14 = arith.constant 0.000000e+00 : f32
    %18 = vector.broadcast %cst_14 : f32 to vector<16x128xf32>
    %19 = arith.maximumf %17, %18 : vector<16x128xf32>
    %20 = vector.broadcast %2 : vector<1x128xf32> to vector<16x128xf32>
    %21 = arith.mulf %19, %20 : vector<16x128xf32>
    %cst_15 = arith.constant dense<0.000000e+00> : vector<16xf32>
    %22 = vector.multi_reduction <add>, %21, %cst_15 [1] : vector<16x128xf32> to vector<16xf32>
    %23 = vector.shape_cast %22 : vector<16xf32> to vector<16x1xf32>
    %24 = vector.broadcast %5 : vector<1x1xf32> to vector<16x1xf32>
    %25 = arith.addf %23, %24 : vector<16x1xf32>
    %26 = arith.index_cast %7 : i32 to index
    %c0_16 = arith.constant 0 : index
    %27 = vector.load %arg8[%26, %c0_16] : memref<16x1xf32, #tpu.memory_space<vmem>>, vector<16x1xf32>
    tpu.vector_store %arg8[%26, %c0_16], %25 {strides = array<i32>} : memref<16x1xf32, #tpu.memory_space<vmem>>, vector<16x1xf32>,
    %c1_i32 = arith.constant 1 : i32
    return
  }
  func.func @transform_0(%arg0: i32) -> (i32, i32) {
    %c0_i32 = arith.constant 0 : i32
    %c0_i32_0 = arith.constant 0 : i32
    return %arg0, %c0_i32 : i32, i32
  }
  func.func @transform_1(%arg0: i32) -> (i32, i32) {
    %c0_i32 = arith.constant 0 : i32
    %c0_i32_0 = arith.constant 0 : i32
    %c0_i32_1 = arith.constant 0 : i32
    return %c0_i32, %c0_i32_0 : i32, i32
  }
  func.func @transform_2(%arg0: i32) -> (i32, i32) {
    %c0_i32 = arith.constant 0 : i32
    %c0_i32_0 = arith.constant 0 : i32
    %c0_i32_1 = arith.constant 0 : i32
    return %c0_i32, %c0_i32_0 : i32, i32
  }
  func.func @transform_3(%arg0: i32) -> (i32, i32) {
    %c0_i32 = arith.constant 0 : i32
    %c0_i32_0 = arith.constant 0 : i32
    %c0_i32_1 = arith.constant 0 : i32
    return %c0_i32, %c0_i32_0 : i32, i32
  }
  func.func @transform_4(%arg0: i32) -> (i32, i32) {
    %c0_i32 = arith.constant 0 : i32
    %c0_i32_0 = arith.constant 0 : i32
    %c0_i32_1 = arith.constant 0 : i32
    return %c0_i32, %c0_i32_0 : i32, i32
  }
  func.func @transform_5(%arg0: i32) -> (i32, i32) {
    %c0_i32 = arith.constant 0 : i32
    %c0_i32_0 = arith.constant 0 : i32
    %c0_i32_1 = arith.constant 0 : i32
    return %c0_i32, %c0_i32_0 : i32, i32
  }
  func.func @transform_6(%arg0: i32) -> (i32, i32) {
    %c0_i32 = arith.constant 0 : i32
    %c0_i32_0 = arith.constant 0 : i32
    %c0_i32_1 = arith.constant 0 : i32
    return %c0_i32, %c0_i32_0 : i32, i32
  }
  func.func @transform_7(%arg0: i32) -> (i32, i32) {
    %c0_i32 = arith.constant 0 : i32
    %c0_i32_0 = arith.constant 0 : i32
    return %arg0, %c0_i32 : i32, i32
  }
}

</mosaic_0001>

<llo_original>
// kernel: mlp_forward.1
$region0: #{mlp_forward.1}
  #allocation0 [shape = 'u32[]', space=smem, size = 0x4, offset = 0x4, fixed_abs, tag = 'smem constant byte address 0x4 - core index']
  #allocation1 [shape = 'u32[144,128]{1,0:T(1,128)}', space=vmem, size = 0x12000, scoped, tag = 'internal scratch']
  #allocation2 [shape = 'f32[1,1]{1,0:T(1,128)S(1)}', space=vmem, size = 0x200, scoped, tag = 'scoped memory for mlp_forward.1']
  %s0 = inlined_call_operand.vmem [shape: f32[16,12], index: 0, kind: input, shape index: {}]
  %s1 = inlined_call_operand.vmem [shape: f32[12,128], index: 1, kind: input, shape index: {}]
  %s2 = inlined_call_operand.vmem [shape: f32[1,128], index: 2, kind: input, shape index: {}]
  %s3 = inlined_call_operand.vmem [shape: f32[128,128], index: 3, kind: input, shape index: {}]
  %s4 = inlined_call_operand.vmem [shape: f32[1,128], index: 4, kind: input, shape index: {}]
  %s5 = inlined_call_operand.vmem [shape: f32[1,128], index: 5, kind: input, shape index: {}]
  %s6 = inlined_call_operand.<no memory space> [shape: f32[1,1], index: 6, kind: input, shape index: {}]
  %s7 = inlined_call_operand.vmem [shape: f32[16,1], index: 7, kind: output, shape index: {}]
  %s8 = sld [smem:[#allocation0]]
  $region38: #{mlp_forward.1} parent=0
    _
  %s10 = ssub.s32 1, %s8
  %s11 = scalar_select 0, %s10, %s8
  %v12 = vstv %s6
  %13 = vst [vmem:[#allocation2] sm:$0x1] %v12
  // Predicated region
  $region2: #{mlp_forward.1} parent=0 // pred_check
    _
  $region3: #{mlp_forward.1} parent=0 // pred_check_branch
    %15 = sbr.rel (0) target = $region5
  $region4: #{mlp_forward.1} parent=0 // pred_region
    _
  $region5: #{mlp_forward.1} parent=0 // pred_fallthru
    _
  // Predicated region
  $region6: #{mlp_forward.1} parent=0 // pred_check
    _
  $region7: #{mlp_forward.1} parent=0 // pred_check_branch
    %17 = sbr.rel (0) target = $region9
  $region8: #{mlp_forward.1} parent=0 // pred_region
    _
  $region9: #{mlp_forward.1} parent=0 // pred_fallthru
    _
  // Predicated region
  $region10: #{mlp_forward.1} parent=0 // pred_check
    _
  $region11: #{mlp_forward.1} parent=0 // pred_check_branch
    %19 = sbr.rel (0) target = $region13
  $region12: #{mlp_forward.1} parent=0 // pred_region
    _
  $region13: #{mlp_forward.1} parent=0 // pred_fallthru
    _
  // Predicated region
  $region14: #{mlp_forward.1} parent=0 // pred_check
    _
  $region15: #{mlp_forward.1} parent=0 // pred_check_branch
    %21 = sbr.rel (0) target = $region17
  $region16: #{mlp_forward.1} parent=0 // pred_region
    _
  $region17: #{mlp_forward.1} parent=0 // pred_fallthru
    _
  // Predicated region
  $region18: #{mlp_forward.1} parent=0 // pred_check
    _
  $region19: #{mlp_forward.1} parent=0 // pred_check_branch
    %23 = sbr.rel (0) target = $region21
  $region20: #{mlp_forward.1} parent=0 // pred_region
    _
  $region21: #{mlp_forward.1} parent=0 // pred_fallthru
    _
  // Predicated region
  $region22: #{mlp_forward.1} parent=0 // pred_check
    _
  $region23: #{mlp_forward.1} parent=0 // pred_check_branch
    %25 = sbr.rel (0) target = $region25
  $region24: #{mlp_forward.1} parent=0 // pred_region
    _
  $region25: #{mlp_forward.1} parent=0 // pred_fallthru
    _
  // Predicated region
  $region26: #{mlp_forward.1} parent=0 // pred_check
    _
  $region27: #{mlp_forward.1} parent=0 // pred_check_branch
    %27 = sbr.rel (0) target = $region29
  $region28: #{mlp_forward.1} parent=0 // pred_region
    _
  $region29: #{mlp_forward.1} parent=0 // pred_fallthru
    _
  %v28 = vld [vmem:[%s1] sm:$0xff]
  %v29 = vld [vmem:[%s1 + $0x8] sm:$0xf]
  %v30 = vld [vmem:[%s3] sm:$0xff]
  %v31 = vld [vmem:[%s3 + $0x8] sm:$0xff]
  %v32 = vld [vmem:[%s3 + $0x10] sm:$0xff]
  %v33 = vld [vmem:[%s3 + $0x18] sm:$0xff]
  %v34 = vld [vmem:[%s3 + $0x20] sm:$0xff]
  %v35 = vld [vmem:[%s3 + $0x28] sm:$0xff]
  %v36 = vld [vmem:[%s3 + $0x30] sm:$0xff]
  %v37 = vld [vmem:[%s3 + $0x38] sm:$0xff]
  %v38 = vld [vmem:[%s3 + $0x40] sm:$0xff]
  %v39 = vld [vmem:[%s3 + $0x48] sm:$0xff]
  %v40 = vld [vmem:[%s3 + $0x50] sm:$0xff]
  %v41 = vld [vmem:[%s3 + $0x58] sm:$0xff]
  %v42 = vld [vmem:[%s3 + $0x60] sm:$0xff]
  %v43 = vld [vmem:[%s3 + $0x68] sm:$0xff]
  %v44 = vld [vmem:[%s3 + $0x70] sm:$0xff]
  %v45 = vld [vmem:[%s3 + $0x78] sm:$0xff]
  %v46 = vld [vmem:[%s5] sm:$0x1]
  %v47 = vld [vmem:[%s2] sm:$0x1]
  %v48 = vld [vmem:[%s4] sm:$0x1]
  %v49 = vld [vmem:[#allocation2] sm:$0x1]
  %v50 = vld [vmem:[%s0] sm:$0xff]
  %v51 = vld [vmem:[%s0 + $0x8] sm:$0xff]
  %v53 = vlaneseq
  %v54 = vshrl.u32 %v53, 7
  %v55 = vsub.s32 0, %v54
  %v56 = vrot.slane %v47, %v55
  %vm58 = vcmask 97280
  %v60 = vsel %vm58, %v50, 0
  %v63 = vsel %vm58, %v51, 0
  %vm65 = vcmask 1043456
  %v67 = vsel %vm65, %v29, 0
  %69 = vmatprep.subr.mxu0 0.0
  %70 = vmatpush1.msra.mxu0 %v28
  %71 = vmatprep.subr.mxu0 0.0
  %72 = vmatpush1.msra.mxu0 %v67
  %73 = vmatprep.subr.mxu0 0.0
  %74 = vmatpush1.msra.mxu0 0.0
  %75 = vmatprep.subr.mxu0 0.0
  %76 = vmatpush1.msra.mxu0 0.0
  %77 = vmatprep.subr.mxu0 0.0
  %78 = vmatpush1.msra.mxu0 0.0
  %79 = vmatprep.subr.mxu0 0.0
  %80 = vmatpush1.msra.mxu0 0.0
  %81 = vmatprep.subr.mxu0 0.0
  %82 = vmatpush1.msra.mxu0 0.0
  %83 = vmatprep.subr.mxu0 0.0
  %84 = vmatpush1.msra.mxu0 0.0
  %85 = vmatprep.subr.mxu0 0.0
  %86 = vmatpush1.msra.mxu0 0.0
  %87 = vmatprep.subr.mxu0 0.0
  %88 = vmatpush1.msra.mxu0 0.0
  %89 = vmatprep.subr.mxu0 0.0
  %90 = vmatpush1.msra.mxu0 0.0
  %91 = vmatprep.subr.mxu0 0.0
  %92 = vmatpush1.msra.mxu0 0.0
  %93 = vmatprep.subr.mxu0 0.0
  %94 = vmatpush1.msra.mxu0 0.0
  %95 = vmatprep.subr.mxu0 0.0
  %96 = vmatpush1.msra.mxu0 0.0
  %97 = vmatprep.subr.mxu0 0.0
  %98 = vmatpush1.msra.mxu0 0.0
  %99 = vmatprep.subr.mxu0 0.0
  %100 = vmatpush1.msra.mxu0 0.0
  %101 = vmatprep.subr.mxu0 0.0
  %102 = vmatpush1.msra.mxu0 0.0
  %103 = vmatprep.subr.mxu0 0.0
  %104 = vmatpush1.msra.mxu0 0.0
  %105 = vmatprep.subr.mxu0 0.0
  %106 = vmatpush1.msra.mxu0 0.0
  %107 = vmatprep.subr.mxu0 0.0
  %108 = vmatpush1.msra.mxu0 0.0
  %109 = vmatprep.subr.mxu0 0.0
  %110 = vmatpush1.msra.mxu0 0.0
  %111 = vmatprep.subr.mxu0 0.0
  %112 = vmatpush1.msra.mxu0 0.0
  %113 = vmatprep.subr.mxu0 0.0
  %114 = vmatpush1.msra.mxu0 0.0
  %115 = vmatprep.subr.mxu0 0.0
  %116 = vmatpush1.msra.mxu0 0.0
  %117 = vmatprep.subr.mxu0 0.0
  %118 = vmatpush1.msra.mxu0 0.0
  %119 = vmatprep.subr.mxu0 0.0
  %120 = vmatpush1.msra.mxu0 0.0
  %121 = vmatprep.subr.mxu0 0.0
  %122 = vmatpush1.msra.mxu0 0.0
  %123 = vmatprep.subr.mxu0 0.0
  %124 = vmatpush1.msra.mxu0 0.0
  %125 = vmatprep.subr.mxu0 0.0
  %126 = vmatpush1.msra.mxu0 0.0
  %127 = vmatprep.subr.mxu0 0.0
  %128 = vmatpush1.msra.mxu0 0.0
  %129 = vmatprep.subr.mxu0 0.0
  %130 = vmatpush1.msra.mxu0 0.0
  %131 = vmatprep.subr.mxu0 0.0
  %132 = vmatpush1.msra.mxu0 0.0
  %133 = vmatprep.mubr.f32.mxu0 0.0
  %134 = vmatmul.mubr.f32.gmra.mrb[0].mxu0 %v60
  %v135 = vpop.f32.mrb[0].mxu0
  %v136 = vadd.f32 %v56, %v135
  %v137 = vpop.f32.mrb[0].mxu0
  %138 = vmatprep.mubr.f32.mxu0 0.0
  %139 = vmatmul.mubr.f32.gmra.mrb[0].mxu0 %v63
  %v140 = vpop.f32.mrb[0].mxu0
  %v141 = vadd.f32 %v56, %v140
  %v142 = vpop.f32.mrb[0].mxu0
  %143 = vdwg.mxu0
  %v144 = vmax.f32 %v136, 0.0
  %v145 = vmax.f32 %v141, 0.0
  %v147 = vlaneseq
  %v148 = vshrl.u32 %v147, 7
  %v149 = vsub.s32 0, %v148
  %v150 = vrot.slane %v48, %v149
  %152 = vmatprep.subr.mxu0 0.0
  %153 = vmatpush1.msra.mxu0 %v30
  %154 = vmatprep.subr.mxu0 0.0
  %155 = vmatpush1.msra.mxu0 %v31
  %156 = vmatprep.subr.mxu0 0.0
  %157 = vmatpush1.msra.mxu0 %v32
  %158 = vmatprep.subr.mxu0 0.0
  %159 = vmatpush1.msra.mxu0 %v33
  %160 = vmatprep.subr.mxu0 0.0
  %161 = vmatpush1.msra.mxu0 %v34
  %162 = vmatprep.subr.mxu0 0.0
  %163 = vmatpush1.msra.mxu0 %v35
  %164 = vmatprep.subr.mxu0 0.0
  %165 = vmatpush1.msra.mxu0 %v36
  %166 = vmatprep.subr.mxu0 0.0
  %167 = vmatpush1.msra.mxu0 %v37
  %168 = vmatprep.subr.mxu0 0.0
  %169 = vmatpush1.msra.mxu0 %v38
  %170 = vmatprep.subr.mxu0 0.0
  %171 = vmatpush1.msra.mxu0 %v39
  %172 = vmatprep.subr.mxu0 0.0
  %173 = vmatpush1.msra.mxu0 %v40
  %174 = vmatprep.subr.mxu0 0.0
  %175 = vmatpush1.msra.mxu0 %v41
  %176 = vmatprep.subr.mxu0 0.0
  %177 = vmatpush1.msra.mxu0 %v42
  %178 = vmatprep.subr.mxu0 0.0
  %179 = vmatpush1.msra.mxu0 %v43
  %180 = vmatprep.subr.mxu0 0.0
  %181 = vmatpush1.msra.mxu0 %v44
  %182 = vmatprep.subr.mxu0 0.0
  %183 = vmatpush1.msra.mxu0 %v45
  %184 = vmatprep.subr.mxu0 0.0
  %185 = vmatpush1.msra.mxu0 0.0
  %186 = vmatprep.subr.mxu0 0.0
  %187 = vmatpush1.msra.mxu0 0.0
  %188 = vmatprep.subr.mxu0 0.0
  %189 = vmatpush1.msra.mxu0 0.0
  %190 = vmatprep.subr.mxu0 0.0
  %191 = vmatpush1.msra.mxu0 0.0
  %192 = vmatprep.subr.mxu0 0.0
  %193 = vmatpush1.msra.mxu0 0.0
  %194 = vmatprep.subr.mxu0 0.0
  %195 = vmatpush1.msra.mxu0 0.0
  %196 = vmatprep.subr.mxu0 0.0
  %197 = vmatpush1.msra.mxu0 0.0
  %198 = vmatprep.subr.mxu0 0.0
  %199 = vmatpush1.msra.mxu0 0.0
  %200 = vmatprep.subr.mxu0 0.0
  %201 = vmatpush1.msra.mxu0 0.0
  %202 = vmatprep.subr.mxu0 0.0
  %203 = vmatpush1.msra.mxu0 0.0
  %204 = vmatprep.subr.mxu0 0.0
  %205 = vmatpush1.msra.mxu0 0.0
  %206 = vmatprep.subr.mxu0 0.0
  %207 = vmatpush1.msra.mxu0 0.0
  %208 = vmatprep.subr.mxu0 0.0
  %209 = vmatpush1.msra.mxu0 0.0
  %210 = vmatprep.subr.mxu0 0.0
  %211 = vmatpush1.msra.mxu0 0.0
  %212 = vmatprep.subr.mxu0 0.0
  %213 = vmatpush1.msra.mxu0 0.0
  %214 = vmatprep.subr.mxu0 0.0
  %215 = vmatpush1.msra.mxu0 0.0
  %216 = vmatprep.mubr.f32.mxu0 0.0
  %217 = vmatmul.mubr.f32.gmra.mrb[0].mxu0 %v144
  %v218 = vpop.f32.mrb[0].mxu0
  %v219 = vadd.f32 %v150, %v218
  %v220 = vpop.f32.mrb[0].mxu0
  %221 = vmatprep.mubr.f32.mxu0 0.0
  %222 = vmatmul.mubr.f32.gmra.mrb[0].mxu0 %v145
  %v223 = vpop.f32.mrb[0].mxu0
  %v224 = vadd.f32 %v150, %v223
  %v225 = vpop.f32.mrb[0].mxu0
  %226 = vdwg.mxu0
  %v227 = vmax.f32 %v219, 0.0
  %v228 = vmax.f32 %v224, 0.0
  %v230 = vlaneseq
  %v231 = vshrl.u32 %v230, 7
  %v232 = vsub.s32 0, %v231
  %v233 = vrot.slane %v46, %v232
  %v235 = vmul.f32 %v227, %v233
  %v236 = vmul.f32 %v228, %v233
  %237 = vadd.xlane.f32.xlu0 %v235
  %v238 = vpop.xlane.xlu0 %237
  %239 = vadd.xlane.f32.xlu0 %v236
  %v240 = vpop.xlane.xlu0 %239
  %v242 = vlaneseq
  %v243 = vshrl.u32 %v242, 7
  %v244 = vsub.s32 0, %v243
  %v245 = vrot.slane %v49, %v244
  %v247 = vadd.f32 %v238, %v245
  %v248 = vadd.f32 %v240, %v245
  %vm249 = vcmask 7168
  %250 = vst.msk [vmem:[%s7] sm:$0xff] %vm249, %v247
  %251 = vst.msk [vmem:[%s7 + $0x8] sm:$0xff] %vm249, %v248
  // Predicated region
  $region30: #{mlp_forward.1} parent=0 // pred_check
    _
  $region31: #{mlp_forward.1} parent=0 // pred_check_branch
    %253 = sbr.rel (0) target = $region33
  $region32: #{mlp_forward.1} parent=0 // pred_region
    _
  $region33: #{mlp_forward.1} parent=0 // pred_fallthru
    _
  // Predicated region
  $region34: #{mlp_forward.1} parent=0 // pred_check
    _
  $region35: #{mlp_forward.1} parent=0 // pred_check_branch
    %255 = sbr.rel (0) target = $region37
  $region36: #{mlp_forward.1} parent=0 // pred_region
    _
  $region37: #{mlp_forward.1} parent=0 // pred_fallthru
    _

</llo_original>
